<compile_context>
chip_gen: v5e
topology: v5e:2x2
jax: 0.10.0
libtpu: 0.0.40
codegen_flags: <defaults>
</compile_context>

<pallas_src>
import functools
import math

import jax
import jax.numpy as jnp
from jax import lax
from jax.experimental import pallas as pl
from jax.experimental.pallas import tpu as pltpu


# --------------------------------------------------------------------------- #
# Kernels
# --------------------------------------------------------------------------- #
def _qkv_matmul_kernel(x_ref, w_ref, o_ref, acc_ref):
    """Tiled x @ w with an f32 VMEM accumulator over the K grid axis."""
    @pl.when(pl.program_id(2) == 0)
    def _init():
        acc_ref[...] = jnp.zeros_like(acc_ref)

    acc_ref[...] += jnp.dot(x_ref[...], w_ref[...],
                            preferred_element_type=jnp.float32)
    o_ref[...] = acc_ref[...].astype(o_ref.dtype)


def _attn_kernel(qkv_ref, mcol_ref, mrow_ref, wo_ref, bo_ref, o_ref, ctx_ref,
                 *, n_head, head_dim, d_out, tq, exp_dtype):
    """Fused multi-head attention + output projection for one (batch, q-tile).

    qkv_ref : (1, S, 3*d_out) lane-dense slab [q*scale | k | v]; its block is
              constant over the q-tile grid axis, so K/V are DMA'd once per
              batch element and stay VMEM-resident.
    mcol_ref: (1, tq, 1) query-side mask for this q tile.
    mrow_ref: (1, 1, S)  key-side mask.
    wo_ref  : (d_out, d_out) output projection in (in, out) layout.
    bo_ref  : (1, d_out) f32 bias.
    ctx_ref : (tq, d_out) f32 VMEM scratch holding all heads' context vectors.
    """
    qi = pl.program_id(1)
    row0 = pl.multiple_of(qi * tq, tq)

    # Combined (tq, S) mask rebuilt in-kernel once (torch outer-AND semantics),
    # shared by all heads: masked(i, j) = mask[i] & mask[j].
    masked = (mcol_ref[0] != 0) & (mrow_ref[0] != 0)

    # Heads: static unroll.  Every iteration ends with a store into ctx_ref, so
    # no per-head intermediate (the (tq, S) score / exp tensors) is live across
    # iterations; n_head is small for FastSpeech-style models.
    # TODO(synk): for head_dim % 128 == 0 move heads onto an 'arbitrary' grid
    #             axis with per-head BlockSpecs (width = head_dim); blocked for
    #             head_dim < 128 by the (8, 128) BlockSpec lane constraint.
    for h in range(n_head):
        lo = h * head_dim
        # 1/sqrt(head_dim) is already folded into the q-projection weights.
        q = qkv_ref[0, pl.ds(row0, tq), lo:lo + head_dim]               # (tq, hd)
        k = qkv_ref[0, :, d_out + lo:d_out + lo + head_dim]             # (S,  hd)
        v = qkv_ref[0, :, 2 * d_out + lo:2 * d_out + lo + head_dim]     # (S,  hd)

        s = lax.dot_general(q, k, (((1,), (1,)), ((), ())),
                            preferred_element_type=jnp.float32)         # (tq, S)
        # masked_fill(-inf) before softmax; fully-masked rows yield NaN exactly
        # like the torch reference.
        s = jnp.where(masked, -jnp.inf, s)

        m = jnp.max(s, axis=-1, keepdims=True)
        z = s - m
        # bf16 exp (EUP) only when running a bf16 pipeline (v6e/v7x); f32 else.
        e = jnp.exp(z.astype(exp_dtype)) if exp_dtype is not None else jnp.exp(z)
        l = jnp.sum(e.astype(jnp.float32), axis=-1, keepdims=True)      # f32 sums
        # TODO(synk): nn.Dropout(p) on the attn weights is identity in eval mode.

        ctx = jnp.dot(e.astype(v.dtype), v,
                      preferred_element_type=jnp.float32)               # (tq, hd)
        # Normalize AFTER PV: tq*head_dim multiplies instead of tq*S.
        ctx_ref[:, lo:lo + head_dim] = ctx * pl.reciprocal(l, approx=True)

    # One fused output projection over the full d_out reduction (full-K MXU
    # utilization instead of n_head matmuls with K = head_dim).
    out = jnp.dot(ctx_ref[...].astype(wo_ref.dtype), wo_ref[...],
                  preferred_element_type=jnp.float32)                   # (tq, d_out)
    o_ref[0] = (out + bo_ref[...].astype(jnp.float32)).astype(o_ref.dtype)


# --------------------------------------------------------------------------- #
# Tiling / VMEM helpers
# --------------------------------------------------------------------------- #
def _vmem_limit_bytes():
    """Per-generation scoped-VMEM budget (v7x: 64 MiB physical; v5e/v6e: 128)."""
    try:
        cap = int(pltpu.get_tpu_info().vmem_capacity_bytes)
    except Exception:                 # query unavailable: keep compiler default
        return None
    if cap < (64 << 20):
        return None
    return min(cap - (16 << 20), 100 << 20)   # ~48 MiB on v7x, 100 MiB on v5e/v6e


def _pick_matmul_tiles(M, K, N):
    """Big tiles obeying the (8, 128) block rules (~85% of HBM roofline)."""
    tm = M if M <= 512 else 512                  # full M or 512 rows
    tn = N if N <= 1024 else 1024                # full N when it fits one tile
    if K <= 1024:
        tk = K                                   # full reduction dim
    else:
        tk = K
        for cand in (1024, 512, 256, 128):       # must divide K exactly so no
            if K % cand == 0:                    # padded garbage enters the sum
                tk = cand
                break
    return tm, tn, tk


def _pick_q_tile(S, target=256):
    """Largest multiple-of-8 divisor of S that is <= target (full S if small)."""
    if S <= target:
        return S
    for cand in range(target, 7, -8):
        if S % cand == 0:
            return cand
    return S      # awkward S: fall back to a single query tile (still correct)


# --------------------------------------------------------------------------- #
# Pallas wrappers
# --------------------------------------------------------------------------- #
def _matmul_pallas(x2d, w_io, vmem_limit=None):
    """Tiled, pipelined x2d:(M,K) @ w_io:(K,N) -> (M,N)."""
    M, K = x2d.shape
    K2, N = w_io.shape
    assert K == K2
    tm, tn, tk = _pick_matmul_tiles(M, K, N)
    cp = dict(dimension_semantics=("parallel", "parallel", "arbitrary"))
    if vmem_limit is not None:
        cp["vmem_limit_bytes"] = vmem_limit
    return pl.pallas_call(
        _qkv_matmul_kernel,
        out_shape=jax.ShapeDtypeStruct((M, N), x2d.dtype),
        grid_spec=pltpu.PrefetchScalarGridSpec(
            num_scalar_prefetch=0,
            grid=(pl.cdiv(M, tm), pl.cdiv(N, tn), K // tk),
            in_specs=[
                pl.BlockSpec((tm, tk), lambda i, j, k: (i, k)),
                pl.BlockSpec((tk, tn), lambda i, j, k: (k, j)),
            ],
            out_specs=pl.BlockSpec((tm, tn), lambda i, j, k: (i, j)),
            scratch_shapes=[pltpu.VMEM((tm, tn), jnp.float32)],
        ),
        compiler_params=pltpu.CompilerParams(**cp),
    )(x2d, w_io)


def _attention_pallas(qkv, mcol, mrow, wo_io, bo_row, *, n_head, head_dim,
                      d_out, out_dtype, exp_dtype, vmem_limit):
    """qkv:(B,S,3*d_out) -> attention + output projection -> (B,S,d_out)."""
    B, S, _ = qkv.shape
    tq = _pick_q_tile(S)
    kernel = functools.partial(_attn_kernel, n_head=n_head, head_dim=head_dim,
                               d_out=d_out, tq=tq, exp_dtype=exp_dtype)
    cp = dict(dimension_semantics=("parallel", "parallel"))
    if vmem_limit is not None:
        cp["vmem_limit_bytes"] = vmem_limit
    # TODO(synk): add a KV-tile inner axis with online-softmax (m/l scratch) so
    #             the (tq, S) scores stay bounded for very long sequences.
    return pl.pallas_call(
        kernel,
        out_shape=jax.ShapeDtypeStruct((B, S, d_out), out_dtype),
        grid_spec=pltpu.PrefetchScalarGridSpec(
            num_scalar_prefetch=0,
            grid=(B, S // tq),
            in_specs=[
                pl.BlockSpec((1, S, 3 * d_out), lambda b, q: (b, 0, 0)),
                pl.BlockSpec((1, tq, 1), lambda b, q: (b, q, 0)),
                pl.BlockSpec((1, 1, S), lambda b, q: (b, 0, 0)),
                pl.BlockSpec((d_out, d_out), lambda b, q: (0, 0)),
                pl.BlockSpec((1, d_out), lambda b, q: (0, 0)),
            ],
            out_specs=pl.BlockSpec((1, tq, d_out), lambda b, q: (b, q, 0)),
            scratch_shapes=[pltpu.VMEM((tq, d_out), jnp.float32)],
        ),
        compiler_params=pltpu.CompilerParams(**cp),
    )(qkv, mcol, mrow, wo_io, bo_row)


# --------------------------------------------------------------------------- #
# Module: params + forward
# --------------------------------------------------------------------------- #
def init_params(key, d_in, d_out, qkv_bias=False):
    assert not qkv_bias, "module default: q/k/v projections are bias-free"
    ks = jax.random.split(key, 5)
    s_in = 1.0 / math.sqrt(d_in)
    s_out = 1.0 / math.sqrt(d_out)
    return {
        # PyTorch nn.Linear weight layout: (out_features, in_features)
        "w_q": jax.random.uniform(ks[0], (d_out, d_in), jnp.float32, -s_in, s_in),
        "w_k": jax.random.uniform(ks[1], (d_out, d_in), jnp.float32, -s_in, s_in),
        "w_v": jax.random.uniform(ks[2], (d_out, d_in), jnp.float32, -s_in, s_in),
        "w_o": jax.random.uniform(ks[3], (d_out, d_out), jnp.float32, -s_out, s_out),
        "b_o": jax.random.uniform(ks[4], (d_out,), jnp.float32, -s_out, s_out),
    }


def prepare_params(params, n_head, compute_dtype=None):
    """One-time weight prep, hoisted out of the per-call forward path.

    * q/k/v weights fused into one (d_in, 3*d_out) matrix (x read once),
    * 1/sqrt(head_dim) folded into the q columns (no in-kernel scale multiply),
    * w_o transposed to (in, out) layout, everything cast to compute_dtype.
    compute_dtype: MXU-operand / activation dtype.  bf16 is recommended on
    v5e / v6e / v7x (bf16-native MXU, halves HBM traffic); accumulation and
    the softmax row sums stay f32.  None keeps the parameter dtype.
    """
    d_out, d_in = params["w_q"].shape
    n_head = int(n_head)
    head_dim = d_out // n_head
    assert head_dim * n_head == d_out, "head dim does not match model dim"
    cdt = (jnp.dtype(compute_dtype) if compute_dtype is not None
           else params["w_q"].dtype)
    scale = 1.0 / math.sqrt(head_dim)
    w_qkv = jnp.concatenate(
        [params["w_q"].T * scale, params["w_k"].T, params["w_v"].T],
        axis=1).astype(cdt)                                    # (d_in, 3*d_out)
    return {
        "w_qkv": w_qkv,
        "w_o": params["w_o"].T.astype(cdt),                    # (d_out, d_out)
        "b_o": params["b_o"].reshape(1, d_out).astype(jnp.float32),
        "n_head": n_head,
        "head_dim": head_dim,
        "d_in": d_in,
        "d_out": d_out,
        "compute_dtype": cdt,
    }


def multi_head_attention(prep, x, mask=None):
    """MultiHeadAttention.forward (eval mode) using prepared params.

    x:    (batch, seq_len, d_in)
    mask: optional (batch, seq_len) bool/int; True = masked position, using the
          torch col&row outer-AND masked_fill(-inf) semantics of the spec.
    """
    B, S, d_in = x.shape
    assert d_in == prep["d_in"]
    d_out, n_head, head_dim = prep["d_out"], prep["n_head"], prep["head_dim"]
    cdt = prep["compute_dtype"]
    out_dtype = x.dtype
    vmem_limit = _vmem_limit_bytes()

    # Fused QKV projection: x is read from HBM exactly once.
    x2d = x.reshape(B * S, d_in).astype(cdt)
    qkv = _matmul_pallas(x2d, prep["w_qkv"], vmem_limit).reshape(B, S, 3 * d_out)
    # TODO(synk): fuse this projection into the attention kernel
    #             (pltpu.emit_pipeline over K tiles) to drop the qkv HBM
    #             round trip entirely; bf16 compute_dtype already halves it.

    mvec = (mask.astype(jnp.int32) if mask is not None
            else jnp.zeros((B, S), jnp.int32))
    mcol = mvec[:, :, None]        # (B, S, 1): query-side mask
    mrow = mvec[:, None, :]        # (B, 1, S): key-side mask

    # bf16 exp (EUP) on bf16 pipelines (v6e/v7x); v5e has no bf16 EUP, where
    # keeping f32 exp avoids extra converts.
    exp_dtype = jnp.bfloat16 if cdt == jnp.dtype(jnp.bfloat16) else None

    return _attention_pallas(
        qkv, mcol, mrow, prep["w_o"], prep["b_o"],
        n_head=n_head, head_dim=head_dim, d_out=d_out, out_dtype=out_dtype,
        exp_dtype=exp_dtype, vmem_limit=vmem_limit)


# --------------------------------------------------------------------------- #
# Pure-JAX reference (sanity check only)
# --------------------------------------------------------------------------- #
def _reference(params, x, n_head, mask=None):
    B, S, _ = x.shape
    d_out = params["w_q"].shape[0]
    hd = d_out // n_head
    q = (x @ params["w_q"].T).reshape(B, S, n_head, hd).transpose(0, 2, 1, 3)
    k = (x @ params["w_k"].T).reshape(B, S, n_head, hd).transpose(0, 2, 1, 3)
    v = (x @ params["w_v"].T).reshape(B, S, n_head, hd).transpose(0, 2, 1, 3)
    s = jnp.einsum("bhqd,bhkd->bhqk", q, k)
    if mask is not None:
        m = mask.astype(bool)
        mm = m[:, None, :] & m[:, :, None]
        s = jnp.where(mm[:, None, :, :], -jnp.inf, s)
    w = jax.nn.softmax(s / hd ** 0.5, axis=-1)
    ctx = jnp.einsum("bhqk,bhkd->bhqd", w, v).transpose(0, 2, 1, 3)
    return ctx.reshape(B, S, d_out) @ params["w_o"].T + params["b_o"]


def _max_rel_err(got, want):
    got = got.astype(jnp.float32)
    want = want.astype(jnp.float32)
    return float(jnp.max(jnp.abs(got - want)) / (jnp.max(jnp.abs(want)) + 1e-6))


if __name__ == "__main__":
    key = jax.random.PRNGKey(0)
    kp1, kx1, kp2, kx2, kp3, kx3 = jax.random.split(key, 6)

    # --- 1) small, spec-consistent shapes (single tile everywhere) ----------
    d_in, d_out, n_head = 32, 32, 4
    batch, seq_len = 2, 8
    params = init_params(kp1, d_in, d_out)
    prep = prepare_params(params, n_head)
    x = jax.random.normal(kx1, (batch, seq_len, d_in), dtype=jnp.float32)
    # True = masked position; keep some keys unmasked per row so no row is
    # fully -inf (torch would produce NaN there as well).
    mask = jnp.zeros((batch, seq_len), dtype=bool).at[:, -2:].set(True)

    out = jax.block_until_ready(multi_head_attention(prep, x, mask=mask))
    assert out.shape == (batch, seq_len, d_out)
    assert _max_rel_err(out, _reference(params, x, n_head, mask=mask)) < 1e-2

    out_nm = jax.block_until_ready(multi_head_attention(prep, x))
    assert _max_rel_err(out_nm, _reference(params, x, n_head)) < 1e-2

    # --- 2) larger shapes exercising multi-tile K accumulation --------------
    d_in2, d_out2, n_head2 = 1536, 256, 2
    batch2, seq2 = 2, 160
    params2 = init_params(kp2, d_in2, d_out2)
    prep2 = prepare_params(params2, n_head2)
    x2 = jax.random.normal(kx2, (batch2, seq2, d_in2), dtype=jnp.float32)
    mask2 = jnp.zeros((batch2, seq2), dtype=bool).at[:, -16:].set(True)

    out2 = jax.block_until_ready(multi_head_attention(prep2, x2, mask=mask2))
    ref2 = _reference(params2, x2, n_head2, mask=mask2)
    assert _max_rel_err(out2, ref2) < 2e-2

    # bf16 MXU-operand / bf16-exp / f32-accumulate path, looser check.
    prep2_bf16 = prepare_params(params2, n_head2, compute_dtype=jnp.bfloat16)
    out_bf16 = jax.block_until_ready(
        multi_head_attention(prep2_bf16, x2, mask=mask2))
    assert _max_rel_err(out_bf16, ref2) < 1e-1

    # --- 3) shapes exercising multiple query tiles (tq=256, 2 q-tiles) ------
    d_in3, d_out3, n_head3 = 256, 256, 4
    batch3, seq3 = 2, 512
    params3 = init_params(kp3, d_in3, d_out3)
    prep3 = prepare_params(params3, n_head3)
    x3 = jax.random.normal(kx3, (batch3, seq3, d_in3), dtype=jnp.float32)
    mask3 = jnp.zeros((batch3, seq3), dtype=bool).at[:, -32:].set(True)

    out3 = jax.block_until_ready(multi_head_attention(prep3, x3, mask=mask3))
    assert _max_rel_err(out3, _reference(params3, x3, n_head3, mask=mask3)) < 2e-2

    print("KERNEL_OK")
</pallas_src>

<mosaic_0001>
module attributes {stable_mosaic.version = 11 : i64} {
  func.func @_qkv_matmul_kernel(%arg0: i32, %arg1: i32, %arg2: i32, %arg3: memref<16x32xf32, #tpu.memory_space<vmem>>, %arg4: memref<32x96xf32, #tpu.memory_space<vmem>>, %arg5: memref<16x96xf32, #tpu.memory_space<vmem>>, %arg6: memref<16x96xf32, #tpu.memory_space<vmem>>) attributes {dimension_semantics = [#tpu.dimension_semantics<parallel>, #tpu.dimension_semantics<parallel>, #tpu.dimension_semantics<arbitrary>], iteration_bounds = array<i64: 1, 1, 1>, scalar_prefetch = 0 : i64, scratch_operands = 1 : i64, tpu.core_type = #tpu.core_type<tc>, window_params = [{transform_indices = @transform_0, window_bounds = array<i64: 16, 32>}, {transform_indices = @transform_1, window_bounds = array<i64: 32, 96>}, {transform_indices = @transform_2, window_bounds = array<i64: 16, 96>}]} {
    %c0_i32 = arith.constant 0 : i32
    %0 = arith.cmpi eq, %arg2, %c0_i32 : i32
    %1 = arith.extui %0 : i1 to i32
    %c0_i32_0 = arith.constant 0 : i32
    %2 = arith.cmpi ne, %1, %c0_i32_0 : i32
    scf.if %2 {
      %cst_12 = arith.constant 0.000000e+00 : f32
      %11 = vector.broadcast %cst_12 : f32 to vector<16x96xf32>
      %c0_13 = arith.constant 0 : index
      %c0_14 = arith.constant 0 : index
      %12 = vector.load %arg6[%c0_13, %c0_14] : memref<16x96xf32, #tpu.memory_space<vmem>>, vector<16x96xf32>
      tpu.vector_store %arg6[%c0_13, %c0_14], %11 {strides = array<i32>} : memref<16x96xf32, #tpu.memory_space<vmem>>, vector<16x96xf32>,
    } else {
    }
    %c0 = arith.constant 0 : index
    %c0_1 = arith.constant 0 : index
    %3 = vector.load %arg6[%c0, %c0_1] : memref<16x96xf32, #tpu.memory_space<vmem>>, vector<16x96xf32>
    %c0_2 = arith.constant 0 : index
    %c0_3 = arith.constant 0 : index
    %4 = vector.load %arg3[%c0_2, %c0_3] : memref<16x32xf32, #tpu.memory_space<vmem>>, vector<16x32xf32>
    %c0_4 = arith.constant 0 : index
    %c0_5 = arith.constant 0 : index
    %5 = vector.load %arg4[%c0_4, %c0_5] : memref<32x96xf32, #tpu.memory_space<vmem>>, vector<32x96xf32>
    %cst = arith.constant dense<0.000000e+00> : vector<16x96xf32>
    %6 = tpu.matmul %4, %5, %cst {dimension_numbers = #tpu.dot_dimension_numbers<[1], [0], [0], [1], [0, 0, 1, 1], [], []>} : vector<16x32xf32>, vector<32x96xf32>, vector<16x96xf32> -> vector<16x96xf32>
    %7 = arith.addf %3, %6 : vector<16x96xf32>
    %c0_6 = arith.constant 0 : index
    %c0_7 = arith.constant 0 : index
    %8 = vector.load %arg6[%c0_6, %c0_7] : memref<16x96xf32, #tpu.memory_space<vmem>>, vector<16x96xf32>
    tpu.vector_store %arg6[%c0_6, %c0_7], %7 {strides = array<i32>} : memref<16x96xf32, #tpu.memory_space<vmem>>, vector<16x96xf32>,
    %c0_8 = arith.constant 0 : index
    %c0_9 = arith.constant 0 : index
    %9 = vector.load %arg6[%c0_8, %c0_9] : memref<16x96xf32, #tpu.memory_space<vmem>>, vector<16x96xf32>
    %c0_10 = arith.constant 0 : index
    %c0_11 = arith.constant 0 : index
    %10 = vector.load %arg5[%c0_10, %c0_11] : memref<16x96xf32, #tpu.memory_space<vmem>>, vector<16x96xf32>
    tpu.vector_store %arg5[%c0_10, %c0_11], %9 {strides = array<i32>} : memref<16x96xf32, #tpu.memory_space<vmem>>, vector<16x96xf32>,
    return
  }
  func.func @transform_0(%arg0: i32, %arg1: i32, %arg2: i32) -> (i32, i32) {
    %c0_i32 = arith.constant 0 : i32
    return %arg0, %arg2 : i32, i32
  }
  func.func @transform_1(%arg0: i32, %arg1: i32, %arg2: i32) -> (i32, i32) {
    %c0_i32 = arith.constant 0 : i32
    return %arg2, %arg1 : i32, i32
  }
  func.func @transform_2(%arg0: i32, %arg1: i32, %arg2: i32) -> (i32, i32) {
    %c0_i32 = arith.constant 0 : i32
    return %arg0, %arg1 : i32, i32
  }
}

</mosaic_0001>

<llo_original>
// kernel: tpu_custom_call.1
$region0: #{tpu_custom_call.1}
  #allocation0 [shape = 'u32[]', space=smem, size = 0x4, offset = 0x4, fixed_abs, tag = 'smem constant byte address 0x4 - core index']
  #allocation1 [shape = 'u32[72,128]{1,0:T(1,128)}', space=vmem, size = 0x9000, scoped, tag = 'internal scratch']
  #allocation2 [shape = 'f32[16,96]{1,0:T(8,128)}', space=vmem, size = 0x2000, scoped, tag = 'scratch operand']
  %s0 = inlined_call_operand.hbm [shape: f32[16,32], index: 0, kind: input, shape index: {}]
  %s1 = inlined_call_operand.hbm [shape: f32[32,96], index: 1, kind: input, shape index: {}]
  %s2 = inlined_call_operand.hbm [shape: f32[16,96], index: 2, kind: output, shape index: {}]
  %s3 = sld [smem:[#allocation0]]
  $region30: #{tpu_custom_call.1} parent=0
    _
  %s5 = ssub.s32 1, %s3
  %s6 = scalar_select 0, %s5, %s3
  $region1: #{tpu_custom_call.1} parent=0
    #allocation3 [shape = 'u8[8192]{0}', space=vmem, size = 0x2000, scoped, tag = 'input window, operand 0, single buffered']
    #allocation4 [shape = 's32[1]{0}', space=sflag, size = 0x4, scoped, tag = 'scoped memory for tpu_custom_call.1']
    #allocation5 [shape = 's32[1]{0}', space=sflag, size = 0x4, scoped, tag = 'scoped memory for tpu_custom_call.1']
    #allocation6 [shape = 'u8[16384]{0}', space=vmem, size = 0x4000, scoped, tag = 'input window, operand 1, single buffered']
    #allocation7 [shape = 's32[1]{0}', space=sflag, size = 0x4, scoped, tag = 'scoped memory for tpu_custom_call.1']
    #allocation8 [shape = 'u8[8192]{0}', space=vmem, size = 0x2000, scoped, tag = 'output window, operand 0, single buffered']
    %7 = vsyncpa [#allocation4], 0
    %8 = vsyncpa [#allocation7], 0
    %9 = vsyncpa [#allocation5], 0
    // Predicated region
    $region2: #{tpu_custom_call.1} parent=1 // pred_check
      _
    $region3: #{tpu_custom_call.1} parent=1 // pred_check_branch
      %11 = sbr.rel (0) target = $region5
    $region4: #{tpu_custom_call.1} parent=1 // pred_region
      %13 = vsyncadd [#allocation4], 0
      %s14 = sshll.u32 %s0, 4
      %s15 = int_to_ptr.hbm [resolvable:$true] %s14
      %s16 = sshll.u32 [#allocation3], 4
      %s17 = int_to_ptr.vmem [resolvable:$true] %s16
      %22 = dma.hbm_to_vmem [thread:$0]  %s15, 256, %s17, [#allocation4], 128, 128, 8
    $region5: #{tpu_custom_call.1} parent=1 // pred_fallthru
      _
    // Predicated region
    $region6: #{tpu_custom_call.1} parent=1 // pred_check
      _
    $region7: #{tpu_custom_call.1} parent=1 // pred_check_branch
      %24 = sbr.rel (0) target = $region9
    $region8: #{tpu_custom_call.1} parent=1 // pred_region
      %26 = vsyncadd [#allocation7], 0
      %s27 = sshll.u32 %s1, 4
      %s28 = int_to_ptr.hbm [resolvable:$true] %s27
      %s29 = sshll.u32 [#allocation6], 4
      %s30 = int_to_ptr.vmem [resolvable:$true] %s29
      %35 = dma.hbm_to_vmem [thread:$0]  %s28, 512, %s30, [#allocation7], 128, 128, 8
    $region9: #{tpu_custom_call.1} parent=1 // pred_fallthru
      _
    // Predicated region
    $region10: #{tpu_custom_call.1} parent=1 // pred_check
      _
    $region11: #{tpu_custom_call.1} parent=1 // pred_check_branch
      %37 = sbr.rel (0) target = $region13
    $region12: #{tpu_custom_call.1} parent=1 // pred_region
      %39 = dma.done [#allocation4], 256
    $region13: #{tpu_custom_call.1} parent=1 // pred_fallthru
      _
    // Predicated region
    $region14: #{tpu_custom_call.1} parent=1 // pred_check
      _
    $region15: #{tpu_custom_call.1} parent=1 // pred_check_branch
      %41 = sbr.rel (0) target = $region17
    $region16: #{tpu_custom_call.1} parent=1 // pred_region
      %43 = dma.done [#allocation7], 512
    $region17: #{tpu_custom_call.1} parent=1 // pred_fallthru
      _
    %p44 = scmp.eq.s32.totalorder 0, 0
    // Predicated region
    $region18: #{tpu_custom_call.1} parent=1 // pred_check
      %p45 = pneg %p44
    $region19: #{tpu_custom_call.1} parent=1 // pred_check_branch
      %47 = sbr.rel (%p45) target = $region21
    $region20: #{tpu_custom_call.1} parent=1 // pred_region
      %vm48 = vcmask 785408
      %49 = vst.msk [vmem:[#allocation2] sm:$0xff] %vm48, 0.0
      %50 = vst.msk [vmem:[#allocation2 + $0x8] sm:$0xff] %vm48, 0.0
    $region21: #{tpu_custom_call.1} parent=1 // pred_fallthru
      _
    %v51 = vld [vmem:[#allocation2] sm:$0xff]
    %v52 = vld [vmem:[#allocation2 + $0x8] sm:$0xff]
    %v53 = vld [vmem:[#allocation3] sm:$0xff]
    %v54 = vld [vmem:[#allocation3 + $0x8] sm:$0xff]
    %v55 = vld [vmem:[#allocation6] sm:$0xff]
    %v56 = vld [vmem:[#allocation6 + $0x8] sm:$0xff]
    %v57 = vld [vmem:[#allocation6 + $0x10] sm:$0xff]
    %v58 = vld [vmem:[#allocation6 + $0x18] sm:$0xff]
    %vm59 = vcmask 261120
    %v61 = vsel %vm59, %v53, 0
    %v64 = vsel %vm59, %v54, 0
    %66 = vmatpush.msra.mxu0 0.0
    %67 = vmatpush.msra.mxu0 0.0
    %68 = vmatpush.msra.mxu0 0.0
    %69 = vmatpush.msra.mxu0 0.0
    %70 = vmatpush.msra.mxu0 0.0
    %71 = vmatpush.msra.mxu0 0.0
    %72 = vmatpush.msra.mxu0 0.0
    %73 = vmatpush.msra.mxu0 0.0
    %74 = vmatpush.msra.mxu0 0.0
    %75 = vmatpush.msra.mxu0 0.0
    %76 = vmatpush.msra.mxu0 0.0
    %77 = vmatpush.msra.mxu0 0.0
    %78 = vmatpush.msra.mxu0 %v58
    %79 = vmatpush.msra.mxu0 %v57
    %80 = vmatpush.msra.mxu0 %v56
    %81 = vmatpush.msra.mxu0 %v55
    %82 = vmatmul.f32.gmra.mxu0 %v61
    %v83 = vpop.f32.mrf.mxu0
    %v84 = vadd.f32 0.0, %v83
    %85 = vmatmul.f32.gmra.mxu0 %v64
    %v86 = vpop.f32.mrf.mxu0
    %v87 = vadd.f32 0.0, %v86
    %88 = vdwg.mxu0
    %v89 = vadd.f32 %v51, %v84
    %v90 = vadd.f32 %v52, %v87
    %vm91 = vcmask 785408
    %92 = vst.msk [vmem:[#allocation2] sm:$0xff] %vm91, %v89
    %93 = vst.msk [vmem:[#allocation2 + $0x8] sm:$0xff] %vm91, %v90
    %v94 = vld [vmem:[#allocation2] sm:$0xff]
    %v95 = vld [vmem:[#allocation2 + $0x8] sm:$0xff]
    %96 = vst.msk [vmem:[#allocation8] sm:$0xff] %vm91, %v94
    %97 = vst.msk [vmem:[#allocation8 + $0x8] sm:$0xff] %vm91, %v95
    // Predicated region
    $region22: #{tpu_custom_call.1} parent=1 // pred_check
      _
    $region23: #{tpu_custom_call.1} parent=1 // pred_check_branch
      %99 = sbr.rel (0) target = $region25
    $region24: #{tpu_custom_call.1} parent=1 // pred_region
      %101 = vsyncadd [#allocation5], 0
      %s102 = sshll.u32 [#allocation8], 4
      %s103 = int_to_ptr.vmem [resolvable:$true] %s102
      %s104 = sshll.u32 %s2, 4
      %s105 = int_to_ptr.hbm [resolvable:$true] %s104
      %110 = dma.vmem_to_hbm [thread:$0]  %s103, 256, %s105, [#allocation5], 128, 128, 8
    $region25: #{tpu_custom_call.1} parent=1 // pred_fallthru
      _
    // Predicated region
    $region26: #{tpu_custom_call.1} parent=1 // pred_check
      _
    $region27: #{tpu_custom_call.1} parent=1 // pred_check_branch
      %112 = sbr.rel (0) target = $region29
    $region28: #{tpu_custom_call.1} parent=1 // pred_region
      %114 = dma.done [#allocation5], 256
    $region29: #{tpu_custom_call.1} parent=1 // pred_fallthru
      _
    %115 = vsyncpa [#allocation4], 1
    %116 = vsyncpa [#allocation7], 1
    %117 = vsyncpa [#allocation5], 1

</llo_original>
